<compile_context>
chip_gen: v7x
topology: tpu7x:2x2x1
jax: 0.10.0
libtpu: 0.0.40
codegen_flags: <defaults>
</compile_context>

<pallas_src>
import functools

import jax
import jax.numpy as jnp
from jax.experimental import pallas as pl
from jax.experimental.pallas import tpu as pltpu


NEG_BIG = -1e30  # finite "-inf": padded action lanes exp() to exactly 0


def _round_up(x, m):
    return ((x + m - 1) // m) * m


def actor_mlp_kernel(x_ref, w1_ref, w2_ref, w3_ref, b_ref, probs_ref):
    """One batch tile: probs = softmax(relu(relu(x@w1+b1)@w2+b2)@w3+b3)."""
    f1 = w1_ref.shape[1]
    f2 = w2_ref.shape[1]
    ap = w3_ref.shape[1]                       # n_actions padded to 128 lanes

    b1 = b_ref[0:1, :f1]                       # [1, f1]  f32
    b2 = b_ref[1:2, :f2]                       # [1, f2]  f32
    b3 = b_ref[2:3, :ap]                       # [1, ap]  f32 (pad = NEG_BIG)

    x = x_ref[...]                             # [TB, D_in] bf16

    # fc1 + ReLU  (bf16 MXU inputs, f32 accumulation)
    h1 = jnp.dot(x, w1_ref[...], preferred_element_type=jnp.float32)
    h1 = jnp.maximum(h1 + b1, 0.0)             # [TB, f1] f32

    # fc2 + ReLU
    h2 = jnp.dot(h1.astype(jnp.bfloat16), w2_ref[...],
                 preferred_element_type=jnp.float32)
    h2 = jnp.maximum(h2 + b2, 0.0)             # [TB, f2] f32

    # fc3 -> logits; padded action lanes get NEG_BIG so they vanish in softmax
    logits = jnp.dot(h2.astype(jnp.bfloat16), w3_ref[...],
                     preferred_element_type=jnp.float32) + b3

    # numerically-stable softmax over the action axis; reciprocal goes to the
    # otherwise-idle EUP slot.
    m = jnp.max(logits, axis=-1, keepdims=True)
    e = jnp.exp(logits - m)
    denom = jnp.sum(e, axis=-1, keepdims=True)
    probs_ref[...] = e * pl.reciprocal(denom, approx=True)

    # TODO(synk): Categorical sampling / log_prob (e.g. fused Gumbel-max via
    # pltpu.prng_seed + pltpu.prng_random_bits) is left to the caller; the
    # probs returned here fully define the distribution.


def pack_params(params, n_actions):
    """f32 [in,out] weights + [1,out] biases -> bf16 weights + packed f32 bias.

    w3 is zero-padded to 128 action lanes (lane-dense output store); the
    matching bias lanes are NEG_BIG so padded probs are exactly 0.
    """
    w1, b1, w2, b2, w3, b3 = params
    f1, f2 = w1.shape[1], w2.shape[1]
    a_pad = _round_up(max(n_actions, 1), 128)
    width = max(f1, f2, a_pad)

    w3p = jnp.zeros((w3.shape[0], a_pad), jnp.float32).at[:, :n_actions].set(w3)

    bias = jnp.zeros((3, width), jnp.float32)
    bias = bias.at[0, :f1].set(b1.reshape(-1))
    bias = bias.at[1, :f2].set(b2.reshape(-1))
    bias = bias.at[2, :a_pad].set(jnp.full((a_pad,), NEG_BIG, jnp.float32))
    bias = bias.at[2, :n_actions].set(b3.reshape(-1))

    return (w1.astype(jnp.bfloat16), w2.astype(jnp.bfloat16),
            w3p.astype(jnp.bfloat16), bias)


@functools.partial(jax.jit, static_argnames=("n_actions",))
def actor_forward(state, packed_params, *, n_actions):
    """state: [B, input_dims] f32 -> probs: [B, n_actions] f32."""
    w1, w2, w3, bias = packed_params
    B, d_in = state.shape
    a_pad = w3.shape[1]

    # Batch tiling: 128 rows per grid step fills MXU rows on v5e and keeps
    # v6e/v7x tiles cheap; weights are DMA'd once and stay VMEM-resident.
    TB = 128 if B >= 128 else _round_up(B, 8)
    B_pad = _round_up(B, TB)
    n_tiles = B_pad // TB

    xb = state.astype(jnp.bfloat16)            # halves activation DMA traffic
    if B_pad != B:
        xb = jnp.pad(xb, ((0, B_pad - B), (0, 0)))

    def const_spec(a):
        return pl.BlockSpec(a.shape, lambda i: (0,) * a.ndim)

    probs = pl.pallas_call(
        actor_mlp_kernel,
        out_shape=jax.ShapeDtypeStruct((B_pad, a_pad), jnp.float32),
        grid_spec=pltpu.PrefetchScalarGridSpec(
            num_scalar_prefetch=0,
            grid=(n_tiles,),
            in_specs=[
                pl.BlockSpec((TB, d_in), lambda i: (i, 0)),     # states stream
                const_spec(w1),                                  # VMEM-resident
                const_spec(w2),
                const_spec(w3),
                const_spec(bias),
            ],
            out_specs=pl.BlockSpec((TB, a_pad), lambda i: (i, 0)),
        ),
        compiler_params=pltpu.CompilerParams(
            dimension_semantics=("parallel",)),  # v7x: shard tiles across 2 TCs
    )(xb, w1, w2, w3, bias)

    return probs[:B, :n_actions]


def init_params(key, input_dims, fc1_dims, fc2_dims, n_actions):
    """PyTorch-Linear-style init U[-1/sqrt(in), 1/sqrt(in)]; weights [in, out]."""
    ks = jax.random.split(key, 6)

    def linear(kw, kb, fan_in, fan_out):
        bound = 1.0 / jnp.sqrt(jnp.float32(fan_in))
        w = jax.random.uniform(kw, (fan_in, fan_out), jnp.float32, -bound, bound)
        b = jax.random.uniform(kb, (1, fan_out), jnp.float32, -bound, bound)
        return w, b

    w1, b1 = linear(ks[0], ks[1], input_dims, fc1_dims)
    w2, b2 = linear(ks[2], ks[3], fc1_dims, fc2_dims)
    w3, b3 = linear(ks[4], ks[5], fc2_dims, n_actions)
    return (w1, b1, w2, b2, w3, b3)


def _reference_probs(state, params):
    w1, b1, w2, b2, w3, b3 = params
    h1 = jnp.maximum(state @ w1 + b1, 0.0)
    h2 = jnp.maximum(h1 @ w2 + b2, 0.0)
    return jax.nn.softmax(h2 @ w3 + b3, axis=-1)


if __name__ == "__main__":
    key = jax.random.PRNGKey(0)
    k_state, k_params = jax.random.split(key)

    # Larger batch (per perf review): fills MXU rows and exercises the
    # batch-tiled, megacore-parallel grid (2 tiles of 128).
    batch = 256
    input_dims = 8      # small observation dim (CartPole-ish env)
    fc1_dims = 256
    fc2_dims = 256
    n_actions = 6

    state = jax.random.normal(k_state, (batch, input_dims), jnp.float32)
    params = init_params(k_params, input_dims, fc1_dims, fc2_dims, n_actions)
    packed = pack_params(params, n_actions)

    probs = actor_forward(state, packed, n_actions=n_actions)
    probs = jax.block_until_ready(probs)

    assert probs.shape == (batch, n_actions)
    # approx reciprocal + bf16 weights -> loosened tolerances
    assert bool(jnp.allclose(jnp.sum(probs, axis=-1), 1.0, atol=1e-2))
    assert bool(jnp.allclose(probs, _reference_probs(state, params), atol=2e-2))

    print("KERNEL_OK")
</pallas_src>

<mosaic_0001>
module attributes {stable_mosaic.version = 11 : i64} {
  func.func @actor_mlp_kernel(%arg0: i32, %arg1: memref<128x8xbf16, #tpu.memory_space<vmem>>, %arg2: memref<8x256xbf16, #tpu.memory_space<vmem>>, %arg3: memref<256x256xbf16, #tpu.memory_space<vmem>>, %arg4: memref<256x128xbf16, #tpu.memory_space<vmem>>, %arg5: memref<3x256xf32, #tpu.memory_space<vmem>>, %arg6: memref<128x128xf32, #tpu.memory_space<vmem>>) attributes {dimension_semantics = [#tpu.dimension_semantics<parallel>], iteration_bounds = array<i64: 2>, scalar_prefetch = 0 : i64, scratch_operands = 0 : i64, tpu.core_type = #tpu.core_type<tc>, window_params = [{transform_indices = @transform_0, window_bounds = array<i64: 128, 8>}, {pipeline_mode = #tpu.pipeline_mode<synchronous>, transform_indices = @transform_1, window_bounds = array<i64: 8, 256>}, {pipeline_mode = #tpu.pipeline_mode<synchronous>, transform_indices = @transform_2, window_bounds = array<i64: 256, 256>}, {pipeline_mode = #tpu.pipeline_mode<synchronous>, transform_indices = @transform_3, window_bounds = array<i64: 256, 128>}, {pipeline_mode = #tpu.pipeline_mode<synchronous>, transform_indices = @transform_4, window_bounds = array<i64: 3, 256>}, {transform_indices = @transform_5, window_bounds = array<i64: 128, 128>}]} {
    %c0 = arith.constant 0 : index
    %c0_0 = arith.constant 0 : index
    %0 = vector.load %arg5[%c0, %c0_0] : memref<3x256xf32, #tpu.memory_space<vmem>>, vector<1x256xf32>
    %c1 = arith.constant 1 : index
    %c0_1 = arith.constant 0 : index
    %1 = vector.load %arg5[%c1, %c0_1] : memref<3x256xf32, #tpu.memory_space<vmem>>, vector<1x256xf32>
    %c2 = arith.constant 2 : index
    %c0_2 = arith.constant 0 : index
    %2 = vector.load %arg5[%c2, %c0_2] : memref<3x256xf32, #tpu.memory_space<vmem>>, vector<1x128xf32>
    %c0_3 = arith.constant 0 : index
    %c0_4 = arith.constant 0 : index
    %3 = vector.load %arg1[%c0_3, %c0_4] : memref<128x8xbf16, #tpu.memory_space<vmem>>, vector<128x8xbf16>
    %c0_5 = arith.constant 0 : index
    %c0_6 = arith.constant 0 : index
    %4 = vector.load %arg2[%c0_5, %c0_6] : memref<8x256xbf16, #tpu.memory_space<vmem>>, vector<8x256xbf16>
    %cst = arith.constant dense<0.000000e+00> : vector<128x256xf32>
    %5 = tpu.matmul %3, %4, %cst {dimension_numbers = #tpu.dot_dimension_numbers<[1], [0], [0], [1], [0, 0, 1, 1], [], []>} : vector<128x8xbf16>, vector<8x256xbf16>, vector<128x256xf32> -> vector<128x256xf32>
    %6 = vector.broadcast %0 : vector<1x256xf32> to vector<128x256xf32>
    %7 = arith.addf %5, %6 : vector<128x256xf32>
    %cst_7 = arith.constant 0.000000e+00 : f32
    %8 = vector.broadcast %cst_7 : f32 to vector<128x256xf32>
    %9 = arith.maximumf %7, %8 : vector<128x256xf32>
    %10 = arith.truncf %9 : vector<128x256xf32> to vector<128x256xbf16>
    %c0_8 = arith.constant 0 : index
    %c0_9 = arith.constant 0 : index
    %11 = vector.load %arg3[%c0_8, %c0_9] : memref<256x256xbf16, #tpu.memory_space<vmem>>, vector<256x256xbf16>
    %cst_10 = arith.constant dense<0.000000e+00> : vector<128x256xf32>
    %12 = tpu.matmul %10, %11, %cst_10 {dimension_numbers = #tpu.dot_dimension_numbers<[1], [0], [0], [1], [0, 0, 1, 1], [], []>} : vector<128x256xbf16>, vector<256x256xbf16>, vector<128x256xf32> -> vector<128x256xf32>
    %13 = vector.broadcast %1 : vector<1x256xf32> to vector<128x256xf32>
    %14 = arith.addf %12, %13 : vector<128x256xf32>
    %cst_11 = arith.constant 0.000000e+00 : f32
    %15 = vector.broadcast %cst_11 : f32 to vector<128x256xf32>
    %16 = arith.maximumf %14, %15 : vector<128x256xf32>
    %17 = arith.truncf %16 : vector<128x256xf32> to vector<128x256xbf16>
    %c0_12 = arith.constant 0 : index
    %c0_13 = arith.constant 0 : index
    %18 = vector.load %arg4[%c0_12, %c0_13] : memref<256x128xbf16, #tpu.memory_space<vmem>>, vector<256x128xbf16>
    %cst_14 = arith.constant dense<0.000000e+00> : vector<128x128xf32>
    %19 = tpu.matmul %17, %18, %cst_14 {dimension_numbers = #tpu.dot_dimension_numbers<[1], [0], [0], [1], [0, 0, 1, 1], [], []>} : vector<128x256xbf16>, vector<256x128xbf16>, vector<128x128xf32> -> vector<128x128xf32>
    %20 = vector.broadcast %2 : vector<1x128xf32> to vector<128x128xf32>
    %21 = arith.addf %19, %20 : vector<128x128xf32>
    %cst_15 = arith.constant dense<0xFF800000> : vector<128xf32>
    %22 = vector.multi_reduction <maximumf>, %21, %cst_15 [1] : vector<128x128xf32> to vector<128xf32>
    %23 = vector.shape_cast %22 : vector<128xf32> to vector<128x1xf32>
    %24 = vector.broadcast %23 : vector<128x1xf32> to vector<128x128xf32>
    %25 = arith.subf %21, %24 : vector<128x128xf32>
    %26 = math.exp %25 : vector<128x128xf32>
    %cst_16 = arith.constant dense<0.000000e+00> : vector<128xf32>
    %27 = vector.multi_reduction <add>, %26, %cst_16 [1] : vector<128x128xf32> to vector<128xf32>
    %28 = vector.shape_cast %27 : vector<128xf32> to vector<128x1xf32>
    %29 = tpu.reciprocal %28 {approx = true} : vector<128x1xf32> -> vector<128x1xf32>
    %30 = vector.broadcast %29 : vector<128x1xf32> to vector<128x128xf32>
    %31 = arith.mulf %26, %30 : vector<128x128xf32>
    %c0_17 = arith.constant 0 : index
    %c0_18 = arith.constant 0 : index
    %32 = vector.load %arg6[%c0_17, %c0_18] : memref<128x128xf32, #tpu.memory_space<vmem>>, vector<128x128xf32>
    tpu.vector_store %arg6[%c0_17, %c0_18], %31 {strides = array<i32>} : memref<128x128xf32, #tpu.memory_space<vmem>>, vector<128x128xf32>,
    return
  }
  func.func @transform_0(%arg0: i32) -> (i32, i32) {
    %c0_i32 = arith.constant 0 : i32
    %c0_i32_0 = arith.constant 0 : i32
    return %arg0, %c0_i32 : i32, i32
  }
  func.func @transform_1(%arg0: i32) -> (i32, i32) {
    %c0_i32 = arith.constant 0 : i32
    %c0_i32_0 = arith.constant 0 : i32
    %c0_i32_1 = arith.constant 0 : i32
    return %c0_i32, %c0_i32_0 : i32, i32
  }
  func.func @transform_2(%arg0: i32) -> (i32, i32) {
    %c0_i32 = arith.constant 0 : i32
    %c0_i32_0 = arith.constant 0 : i32
    %c0_i32_1 = arith.constant 0 : i32
    return %c0_i32, %c0_i32_0 : i32, i32
  }
  func.func @transform_3(%arg0: i32) -> (i32, i32) {
    %c0_i32 = arith.constant 0 : i32
    %c0_i32_0 = arith.constant 0 : i32
    %c0_i32_1 = arith.constant 0 : i32
    return %c0_i32, %c0_i32_0 : i32, i32
  }
  func.func @transform_4(%arg0: i32) -> (i32, i32) {
    %c0_i32 = arith.constant 0 : i32
    %c0_i32_0 = arith.constant 0 : i32
    %c0_i32_1 = arith.constant 0 : i32
    return %c0_i32, %c0_i32_0 : i32, i32
  }
  func.func @transform_5(%arg0: i32) -> (i32, i32) {
    %c0_i32 = arith.constant 0 : i32
    %c0_i32_0 = arith.constant 0 : i32
    return %arg0, %c0_i32 : i32, i32
  }
}

</mosaic_0001>

<llo_original>
// kernel: actor_forward.1
$region0: #{actor_forward.1}
  #allocation0 [shape = 'u32[]', space=smem, size = 0x4, offset = 0x4, fixed_abs, tag = 'smem constant byte address 0x4 - core index']
  #allocation1 [shape = 'u32[144,128]{1,0:T(1,128)}', space=vmem, size = 0x12000, scoped, tag = 'internal scratch']
  %s0 = inlined_call_operand.vmem [shape: bf16[256,8], index: 0, kind: input, shape index: {}]
  %s1 = inlined_call_operand.vmem [shape: bf16[8,256], index: 1, kind: input, shape index: {}]
  %s2 = inlined_call_operand.hbm [shape: bf16[256,256], index: 2, kind: input, shape index: {}]
  %s3 = inlined_call_operand.vmem [shape: bf16[256,128], index: 3, kind: input, shape index: {}]
  %s4 = inlined_call_operand.vmem [shape: f32[3,256], index: 4, kind: input, shape index: {}]
  %s5 = inlined_call_operand.vmem [shape: f32[256,128], index: 5, kind: output, shape index: {}]
  %s6 = sld [smem:[#allocation0]]
  $region57: #{actor_forward.1} parent=0
    _
  %s8 = ssub.s32 1, %s6
  %s9 = scalar_select 0, %s8, %s6
  $region1: #{actor_forward.1} parent=0
    #allocation2 [shape = 'u8[131072]{0}', space=vmem, size = 0x20000, scoped, tag = 'input window, operand 2, single buffered']
    #allocation3 [shape = 's32[2]{0}', space=sflag, size = 0x8, scoped, tag = 'scoped memory for actor_forward.1']
    %10 = vsyncpa [#allocation3], 0
    loop: start=0, step=1, limit=4
    $region2: #{actor_forward.1} parent=1 // loop_pre_header
      _
    $region3: #{actor_forward.1} parent=1 // loop_header
      %s12 = sphi 0, %s16
      %p13 = scmp.ge.s32.totalorder %s12, 4
      %s22 = sphi 0, %s24
      %s25 = sphi 0, %s22
      %s26 = sphi 0, %s25
      %s42 = sphi 0, %s26
      %s46 = sphi 0, %s46
      %s48 = sphi 0, %s46
      %s49 = sphi 0, %s48
      %s63 = sphi 0, %s49
      %s67 = sphi 0, %s67
      %s69 = sphi 0, %s67
      %s70 = sphi 0, %s69
      %s84 = sphi 0, %s70
      %s88 = sphi 0, %s88
      %s90 = sphi 0, %s88
      %s91 = sphi 0, %s90
      %s105 = sphi 0, %s91
      %s109 = sphi 0, %s109
      %s111 = sphi 0, %s109
      %s112 = sphi 0, %s111
      %s126 = sphi 0, %s112
      %s132 = sphi 0, %s134
      %s135 = sphi 0, %s132
      %s136 = sphi 0, %s135
      %s152 = sphi 0, %s136
    $region4: #{actor_forward.1} parent=1 // loop_header_branch
      %15 = sbr.rel (%p13) target = $region8
    $region5: #{actor_forward.1} parent=1 // loop_body
      %s17 = ssub.s32 %s12, 1
      %s18 = ssub.s32 %s12, 2
      %s19 = sadd.s32 %s12, 1
      %s20 = ssub.s32 %s12, %s19
      %p21 = scmp.eq.s32.totalorder %s20, 0
      %s23 = sadd.s32 %s22, 1
      %s24 = scalar_select %p21, %s22, %s23
      %p27 = pneg %p21
      %p28 = scmp.eq.s32.totalorder %s12, 1
      %p29 = por %p27, %p28
      %p30 = scmp.ne.s32.totalorder %s22, %s25
      %p31 = scmp.eq.s32.totalorder %s12, 0
      %p32 = por %p30, %p31
      %p33 = scmp.ne.s32.totalorder %s22, %s25
      %p34 = scmp.eq.s32.totalorder %s17, 1
      %p35 = por %p33, %p34
      %p36 = scmp.ne.s32.totalorder %s25, %s26
      %p37 = scmp.eq.s32.totalorder %s17, 0
      %p38 = por %p36, %p37
      %p39 = scmp.ne.s32.totalorder %s25, %s26
      %p40 = scmp.eq.s32.totalorder %s18, 1
      %p41 = por %p39, %p40
      %p43 = scmp.ne.s32.totalorder %s26, %s42
      %p44 = scmp.eq.s32.totalorder %s18, 0
      %p45 = por %p43, %p44
      %s47 = sadd.s32 %s46, 1
      %p50 = scmp.eq.s32.totalorder %s12, 1
      %p51 = scmp.ne.s32.totalorder %s46, %s48
      %p52 = scmp.eq.s32.totalorder %s12, 0
      %p53 = por %p51, %p52
      %p54 = scmp.ne.s32.totalorder %s46, %s48
      %p55 = scmp.eq.s32.totalorder %s17, 1
      %p56 = por %p54, %p55
      %p57 = scmp.ne.s32.totalorder %s48, %s49
      %p58 = scmp.eq.s32.totalorder %s17, 0
      %p59 = por %p57, %p58
      %p60 = scmp.ne.s32.totalorder %s48, %s49
      %p61 = scmp.eq.s32.totalorder %s18, 1
      %p62 = por %p60, %p61
      %p64 = scmp.ne.s32.totalorder %s49, %s63
      %p65 = scmp.eq.s32.totalorder %s18, 0
      %p66 = por %p64, %p65
      %s68 = sadd.s32 %s67, 1
      %p71 = scmp.eq.s32.totalorder %s12, 1
      %p72 = scmp.ne.s32.totalorder %s67, %s69
      %p73 = scmp.eq.s32.totalorder %s12, 0
      %p74 = por %p72, %p73
      %p75 = scmp.ne.s32.totalorder %s67, %s69
      %p76 = scmp.eq.s32.totalorder %s17, 1
      %p77 = por %p75, %p76
      %p78 = scmp.ne.s32.totalorder %s69, %s70
      %p79 = scmp.eq.s32.totalorder %s17, 0
      %p80 = por %p78, %p79
      %p81 = scmp.ne.s32.totalorder %s69, %s70
      %p82 = scmp.eq.s32.totalorder %s18, 1
      %p83 = por %p81, %p82
      %p85 = scmp.ne.s32.totalorder %s70, %s84
      %p86 = scmp.eq.s32.totalorder %s18, 0
      %p87 = por %p85, %p86
      %s89 = sadd.s32 %s88, 1
      %p92 = scmp.eq.s32.totalorder %s12, 1
      %p93 = scmp.ne.s32.totalorder %s88, %s90
      %p94 = scmp.eq.s32.totalorder %s12, 0
      %p95 = por %p93, %p94
      %p96 = scmp.ne.s32.totalorder %s88, %s90
      %p97 = scmp.eq.s32.totalorder %s17, 1
      %p98 = por %p96, %p97
      %p99 = scmp.ne.s32.totalorder %s90, %s91
      %p100 = scmp.eq.s32.totalorder %s17, 0
      %p101 = por %p99, %p100
      %p102 = scmp.ne.s32.totalorder %s90, %s91
      %p103 = scmp.eq.s32.totalorder %s18, 1
      %p104 = por %p102, %p103
      %p106 = scmp.ne.s32.totalorder %s91, %s105
      %p107 = scmp.eq.s32.totalorder %s18, 0
      %p108 = por %p106, %p107
      %s110 = sadd.s32 %s109, 1
      %p113 = scmp.eq.s32.totalorder %s12, 1
      %p114 = scmp.ne.s32.totalorder %s109, %s111
      %p115 = scmp.eq.s32.totalorder %s12, 0
      %p116 = por %p114, %p115
      %p117 = scmp.ne.s32.totalorder %s109, %s111
      %p118 = scmp.eq.s32.totalorder %s17, 1
      %p119 = por %p117, %p118
      %p120 = scmp.ne.s32.totalorder %s111, %s112
      %p121 = scmp.eq.s32.totalorder %s17, 0
      %p122 = por %p120, %p121
      %p123 = scmp.ne.s32.totalorder %s111, %s112
      %p124 = scmp.eq.s32.totalorder %s18, 1
      %p125 = por %p123, %p124
      %p127 = scmp.ne.s32.totalorder %s112, %s126
      %p128 = scmp.eq.s32.totalorder %s18, 0
      %p129 = por %p127, %p128
      %s130 = ssub.s32 %s12, %s19
      %p131 = scmp.eq.s32.totalorder %s130, 0
      %s133 = sadd.s32 %s132, 1
      %s134 = scalar_select %p131, %s132, %s133
      %p137 = pneg %p131
      %p138 = scmp.eq.s32.totalorder %s12, 1
      %p139 = por %p137, %p138
      %p140 = scmp.ne.s32.totalorder %s132, %s135
      %p141 = scmp.eq.s32.totalorder %s12, 0
      %p142 = por %p140, %p141
      %p143 = scmp.ne.s32.totalorder %s132, %s135
      %p144 = scmp.eq.s32.totalorder %s17, 1
      %p145 = por %p143, %p144
      %p146 = scmp.ne.s32.totalorder %s135, %s136
      %p147 = scmp.eq.s32.totalorder %s17, 0
      %p148 = por %p146, %p147
      %p149 = scmp.ne.s32.totalorder %s135, %s136
      %p150 = scmp.eq.s32.totalorder %s18, 1
      %p151 = por %p149, %p150
      %p153 = scmp.ne.s32.totalorder %s136, %s152
      %p154 = scmp.eq.s32.totalorder %s18, 0
      %p155 = por %p153, %p154
      %p156 = scmp.le.s32.totalorder 1, %s12
      %p157 = scmp.lt.s32.totalorder %s12, 3
      %p158 = pnand %p156, %p157
      %p159 = pneg %p158
      // Predicated region
      $region9: #{actor_forward.1} parent=5 // pred_check
        _
      $region10: #{actor_forward.1} parent=5 // pred_check_branch
        %161 = sbr.rel (%p158) target = $region12
      $region11: #{actor_forward.1} parent=5 // pred_region
        %s162 = ssub.s32 %s12, 1
        // Predicated region
        $region13: #{actor_forward.1} parent=11 // pred_check
          %p163 = pneg %p59
        $region14: #{actor_forward.1} parent=11 // pred_check_branch
          %165 = sbr.rel (%p163) target = $region16
        $region15: #{actor_forward.1} parent=11 // pred_region
          _
        $region16: #{actor_forward.1} parent=11 // pred_fallthru
          _
        // Predicated region
        $region17: #{actor_forward.1} parent=11 // pred_check
          %p166 = pneg %p80
        $region18: #{actor_forward.1} parent=11 // pred_check_branch
          %168 = sbr.rel (%p166) target = $region20
        $region19: #{actor_forward.1} parent=11 // pred_region
          %s170 = ssub.s32 4096, 4096
          %171 = vsyncadd [#allocation3], %s170
          %s172 = sshll.u32 [#allocation2], 4
          %s173 = int_to_ptr.vmem [resolvable:$true] %s172
          %178 = dma.hbm_to_vmem [thread:$0]  %s2, 4096, %s173, [#allocation3], 128, 128, 8
        $region20: #{actor_forward.1} parent=11 // pred_fallthru
          _
        // Predicated region
        $region21: #{actor_forward.1} parent=11 // pred_check
          %p179 = pneg %p101
        $region22: #{actor_forward.1} parent=11 // pred_check_branch
          %181 = sbr.rel (%p179) target = $region24
        $region23: #{actor_forward.1} parent=11 // pred_region
          _
        $region24: #{actor_forward.1} parent=11 // pred_fallthru
          _
        // Predicated region
        $region25: #{actor_forward.1} parent=11 // pred_check
          %p182 = pneg %p122
        $region26: #{actor_forward.1} parent=11 // pred_check_branch
          %184 = sbr.rel (%p182) target = $region28
        $region27: #{actor_forward.1} parent=11 // pred_region
          _
        $region28: #{actor_forward.1} parent=11 // pred_fallthru
          _
      $region12: #{actor_forward.1} parent=5 // pred_fallthru
        _
      %p185 = scmp.lt.s32.totalorder %s12, 2
      // Predicated region
      $region29: #{actor_forward.1} parent=5 // pred_check
        %p186 = pneg %p185
      $region30: #{actor_forward.1} parent=5 // pred_check_branch
        %188 = sbr.rel (%p186) target = $region32
      $region31: #{actor_forward.1} parent=5 // pred_region
        // Predicated region
        $region33: #{actor_forward.1} parent=31 // pred_check
          %p189 = pneg %p32
        $region34: #{actor_forward.1} parent=31 // pred_check_branch
          %191 = sbr.rel (%p189) target = $region36
        $region35: #{actor_forward.1} parent=31 // pred_region
          %s192 = smul.u32 16, %s12
          %p193 = scmp.lt.s32.totalorder %s192, 31
          %s194 = scalar_select %p193, %s192, 31
          %s195 = smul.addr %s194, 4
          %s196 = scalar_lea.vmem %s0, %s195
          %s197 = smul.u32 16, %s12
        $region36: #{actor_forward.1} parent=31 // pred_fallthru
          _
      $region32: #{actor_forward.1} parent=5 // pred_fallthru
        _
      %p198 = scmp.le.s32.totalorder 1, %s12
      %p199 = scmp.lt.s32.totalorder %s12, 3
      %p200 = pnand %p198, %p199
      %p201 = pneg %p200
      // Predicated region
      $region37: #{actor_forward.1} parent=5 // pred_check
        _
      $region38: #{actor_forward.1} parent=5 // pred_check_branch
        %203 = sbr.rel (%p200) target = $region40
      $region39: #{actor_forward.1} parent=5 // pred_region
        %s204 = ssub.s32 %s12, 1
        // Predicated region
        $region41: #{actor_forward.1} parent=39 // pred_check
          %p205 = pneg %p80
        $region42: #{actor_forward.1} parent=39 // pred_check_branch
          %207 = sbr.rel (%p205) target = $region44
        $region43: #{actor_forward.1} parent=39 // pred_region
          %208 = dma.done [#allocation3], 4096
        $region44: #{actor_forward.1} parent=39 // pred_fallthru
          _
        %s209 = smul.u32 16, %s17
        %p210 = scmp.lt.s32.totalorder %s209, 31
        %s211 = scalar_select %p210, %s209, 31
        %s212 = smul.addr %s211, 4
        %s213 = scalar_lea.vmem %s0, %s212
        %p214 = pneg %p38
        %p215 = pneg %p35
        %p216 = pneg %p59
        %p217 = pneg %p56
        %p218 = pneg %p80
        %p219 = pneg %p77
        %p220 = pneg %p101
        %p221 = pneg %p98
        %p222 = pneg %p122
        %p223 = pneg %p119
        %p224 = pneg %p148
        %p225 = pneg %p145
        %s226 = smul.u32 16, %s17
        %p227 = scmp.lt.s32.totalorder %s226, 31
        %s228 = scalar_select %p227, %s226, 31
        %s229 = smul.addr %s228, 8
        %s230 = scalar_lea.vmem %s5, %s229
        %s231 = smul.u32 16, %s17
        %p232 = scmp.lt.s32.totalorder %s231, 31
        %s233 = scalar_select %p232, %s231, 31
        %s234 = smul.addr %s233, 4
        %s235 = scalar_lea.vmem %s0, %s234
        %s236 = smul.u32 16, %s17
        %s237 = smul.u32 16, %s17
        %p238 = scmp.lt.s32.totalorder %s237, 31
        %s239 = scalar_select %p238, %s237, 31
        %s240 = smul.addr %s239, 8
        %s241 = scalar_lea.vmem %s5, %s240
        %s242 = smul.u32 16, %s17
        %v244 = vld [vmem:[%s4] ss:$4 sm:$0x3]
        %s245 = scalar_lea.vmem %s4, 1
        %v246 = vld [vmem:[%s245] ss:$4 sm:$0x3]
        %v247 = vld [vmem:[%s4 + $0x2] sm:$0x1]
        %v248 = vld [vmem:[%s235] sm:$0xf]
        %v249 = vld [vmem:[%s235 + $0x4] sm:$0xf]
        %v250 = vld [vmem:[%s235 + $0x8] sm:$0xf]
        %v251 = vld [vmem:[%s235 + $0xc] sm:$0xf]
        %v252 = vld [vmem:[%s235 + $0x10] sm:$0xf]
        %v253 = vld [vmem:[%s235 + $0x14] sm:$0xf]
        %v254 = vld [vmem:[%s235 + $0x18] sm:$0xf]
        %v255 = vld [vmem:[%s235 + $0x1c] sm:$0xf]
        %v256 = vld [vmem:[%s235 + $0x20] sm:$0xf]
        %v257 = vld [vmem:[%s235 + $0x24] sm:$0xf]
        %v258 = vld [vmem:[%s235 + $0x28] sm:$0xf]
        %v259 = vld [vmem:[%s235 + $0x2c] sm:$0xf]
        %v260 = vld [vmem:[%s235 + $0x30] sm:$0xf]
        %v261 = vld [vmem:[%s235 + $0x34] sm:$0xf]
        %v262 = vld [vmem:[%s235 + $0x38] sm:$0xf]
        %v263 = vld [vmem:[%s235 + $0x3c] sm:$0xf]
        %v264 = vld [vmem:[%s1] sm:$0xff]
        %v266 = vlaneseq
        %v267 = vshrl.u32 %v266, 7
        %v268 = vsub.s32 0, %v267
        %v269 = vrot.slane %v244, %v268
        %v270 = vlaneseq
        %v271 = vshrl.u32 %v270, 7
        %v272 = vsub.s32 1, %v271
        %v273 = vrot.slane %v244, %v272
        %v292 = vunpack.c.l.b16 %v248
        %v293 = vunpack.c.l.b16 %v249
        %v294 = vunpack.c.l.b16 %v250
        %v295 = vunpack.c.l.b16 %v251
        %v296 = vunpack.c.l.b16 %v252
        %v297 = vunpack.c.l.b16 %v253
        %v298 = vunpack.c.l.b16 %v254
        %v299 = vunpack.c.l.b16 %v255
        %v300 = vunpack.c.l.b16 %v256
        %v301 = vunpack.c.l.b16 %v257
        %v302 = vunpack.c.l.b16 %v258
        %v303 = vunpack.c.l.b16 %v259
        %v304 = vunpack.c.l.b16 %v260
        %v305 = vunpack.c.l.b16 %v261
        %v306 = vunpack.c.l.b16 %v262
        %v307 = vunpack.c.l.b16 %v263
        %v308 = vpack.c.b16 %v293, %v292
        %v309 = vpack.c.b16 %v295, %v294
        %v310 = vpack.c.b16 %v297, %v296
        %v311 = vpack.c.b16 %v299, %v298
        %v312 = vpack.c.b16 %v301, %v300
        %v313 = vpack.c.b16 %v303, %v302
        %v314 = vpack.c.b16 %v305, %v304
        %v315 = vpack.c.b16 %v307, %v306
        %v317 = vunpack.c.l.b16 %v264
        %v318 = vunpack.c.h.b16 %v264
        %v319 = vpack.c.b16 %v317, %v317
        %v320 = vpack.c.b16 %v318, %v318
        %vm321 = vcmask 64512
        %v323 = vsel %vm321, %v308, 0
        %v326 = vsel %vm321, %v309, 0
        %v329 = vsel %vm321, %v310, 0
        %v332 = vsel %vm321, %v311, 0
        %v335 = vsel %vm321, %v312, 0
        %v338 = vsel %vm321, %v313, 0
        %v341 = vsel %vm321, %v314, 0
        %v344 = vsel %vm321, %v315, 0
        %vm346 = vcmask 1043456
        %v348 = vsel %vm346, %v319, 0
        %v351 = vsel %vm346, %v320, 0
        %353 = vmatprep.subr.bf16.mxu0 %v351
        %354 = vmatpush1.bf16.msra.mxu0 %v348
        %355 = vmatprep.subr.bf16.mxu0 0
        %356 = vmatpush1.bf16.msra.mxu0 0
        %357 = vmatprep.subr.bf16.mxu0 0
        %358 = vmatpush1.bf16.msra.mxu0 0
        %359 = vmatprep.subr.bf16.mxu0 0
        %360 = vmatpush1.bf16.msra.mxu0 0
        %361 = vmatprep.subr.bf16.mxu0 0
        %362 = vmatpush1.bf16.msra.mxu0 0
        %363 = vmatprep.subr.bf16.mxu0 0
        %364 = vmatpush1.bf16.msra.mxu0 0
        %365 = vmatprep.subr.bf16.mxu0 0
        %366 = vmatpush1.bf16.msra.mxu0 0
        %367 = vmatprep.subr.bf16.mxu0 0
        %368 = vmatpush1.bf16.msra.mxu0 0
        %369 = vmatprep.subr.bf16.mxu0 0
        %370 = vmatpush1.bf16.msra.mxu0 0
        %371 = vmatprep.subr.bf16.mxu0 0
        %372 = vmatpush1.bf16.msra.mxu0 0
        %373 = vmatprep.subr.bf16.mxu0 0
        %374 = vmatpush1.bf16.msra.mxu0 0
        %375 = vmatprep.subr.bf16.mxu0 0
        %376 = vmatpush1.bf16.msra.mxu0 0
        %377 = vmatprep.subr.bf16.mxu0 0
        %378 = vmatpush1.bf16.msra.mxu0 0
        %379 = vmatprep.subr.bf16.mxu0 0
        %380 = vmatpush1.bf16.msra.mxu0 0
        %381 = vmatprep.subr.bf16.mxu0 0
        %382 = vmatpush1.bf16.msra.mxu0 0
        %383 = vmatprep.subr.bf16.mxu0 0
        %384 = vmatpush1.bf16.msra.mxu0 0
        %385 = vmatprep.mubr.bf16.mxu0 0
        %386 = vmatmul.mubr.bf16.gmra.mrb[0].mxu0 %v323
        %v387 = vpop.f32.mrb[0].mxu0
        %v388 = vadd.f32 %v269, %v387
        %v389 = vpop.f32.mrb[0].mxu0
        %v390 = vadd.f32 %v273, %v389
        %v391 = vpop.f32.mrb[0].mxu0
        %v392 = vadd.f32 %v269, %v391
        %v393 = vpop.f32.mrb[0].mxu0
        %v394 = vadd.f32 %v273, %v393
        %395 = vmatprep.mubr.bf16.mxu0 0
        %396 = vmatmul.mubr.bf16.gmra.mrb[0].mxu0 %v326
        %v397 = vpop.f32.mrb[0].mxu0
        %v398 = vadd.f32 %v269, %v397
        %v399 = vpop.f32.mrb[0].mxu0
        %v400 = vadd.f32 %v273, %v399
        %v401 = vpop.f32.mrb[0].mxu0
        %v402 = vadd.f32 %v269, %v401
        %v403 = vpop.f32.mrb[0].mxu0
        %v404 = vadd.f32 %v273, %v403
        %405 = vmatprep.mubr.bf16.mxu0 0
        %406 = vmatmul.mubr.bf16.gmra.mrb[0].mxu0 %v329
        %v407 = vpop.f32.mrb[0].mxu0
        %v408 = vadd.f32 %v269, %v407
        %v409 = vpop.f32.mrb[0].mxu0
        %v410 = vadd.f32 %v273, %v409
        %v411 = vpop.f32.mrb[0].mxu0
        %v412 = vadd.f32 %v269, %v411
        %v413 = vpop.f32.mrb[0].mxu0
        %v414 = vadd.f32 %v273, %v413
        %415 = vmatprep.mubr.bf16.mxu0 0
        %416 = vmatmul.mubr.bf16.gmra.mrb[0].mxu0 %v332
        %v417 = vpop.f32.mrb[0].mxu0
        %v418 = vadd.f32 %v269, %v417
        %v419 = vpop.f32.mrb[0].mxu0
        %v420 = vadd.f32 %v273, %v419
        %v421 = vpop.f32.mrb[0].mxu0
        %v422 = vadd.f32 %v269, %v421
        %v423 = vpop.f32.mrb[0].mxu0
        %v424 = vadd.f32 %v273, %v423
        %425 = vmatprep.mubr.bf16.mxu0 0
        %426 = vmatmul.mubr.bf16.gmra.mrb[0].mxu0 %v335
        %v427 = vpop.f32.mrb[0].mxu0
        %v428 = vadd.f32 %v269, %v427
        %v429 = vpop.f32.mrb[0].mxu0
        %v430 = vadd.f32 %v273, %v429
        %v431 = vpop.f32.mrb[0].mxu0
        %v432 = vadd.f32 %v269, %v431
        %v433 = vpop.f32.mrb[0].mxu0
        %v434 = vadd.f32 %v273, %v433
        %435 = vmatprep.mubr.bf16.mxu0 0
        %436 = vmatmul.mubr.bf16.gmra.mrb[0].mxu0 %v338
        %v437 = vpop.f32.mrb[0].mxu0
        %v438 = vadd.f32 %v269, %v437
        %v439 = vpop.f32.mrb[0].mxu0
        %v440 = vadd.f32 %v273, %v439
        %v441 = vpop.f32.mrb[0].mxu0
        %v442 = vadd.f32 %v269, %v441
        %v443 = vpop.f32.mrb[0].mxu0
        %v444 = vadd.f32 %v273, %v443
        %445 = vmatprep.mubr.bf16.mxu0 0
        %446 = vmatmul.mubr.bf16.gmra.mrb[0].mxu0 %v341
        %v447 = vpop.f32.mrb[0].mxu0
        %v448 = vadd.f32 %v269, %v447
        %v449 = vpop.f32.mrb[0].mxu0
        %v450 = vadd.f32 %v273, %v449
        %v451 = vpop.f32.mrb[0].mxu0
        %v452 = vadd.f32 %v269, %v451
        %v453 = vpop.f32.mrb[0].mxu0
        %v454 = vadd.f32 %v273, %v453
        %455 = vmatprep.mubr.bf16.mxu0 0
        %456 = vmatmul.mubr.bf16.gmra.mrb[0].mxu0 %v344
        %v457 = vpop.f32.mrb[0].mxu0
        %v458 = vadd.f32 %v269, %v457
        %v459 = vpop.f32.mrb[0].mxu0
        %v460 = vadd.f32 %v273, %v459
        %v461 = vpop.f32.mrb[0].mxu0
        %v462 = vadd.f32 %v269, %v461
        %v463 = vpop.f32.mrb[0].mxu0
        %v464 = vadd.f32 %v273, %v463
        %465 = vdwg.mxu0
        %v466 = vmax.f32 %v388, 0.0
        %v467 = vmax.f32 %v390, 0.0
        %v468 = vmax.f32 %v392, 0.0
        %v469 = vmax.f32 %v394, 0.0
        %v470 = vmax.f32 %v398, 0.0
        %v471 = vmax.f32 %v400, 0.0
        %v472 = vmax.f32 %v402, 0.0
        %v473 = vmax.f32 %v404, 0.0
        %v474 = vmax.f32 %v408, 0.0
        %v475 = vmax.f32 %v410, 0.0
        %v476 = vmax.f32 %v412, 0.0
        %v477 = vmax.f32 %v414, 0.0
        %v478 = vmax.f32 %v418, 0.0
        %v479 = vmax.f32 %v420, 0.0
        %v480 = vmax.f32 %v422, 0.0
        %v481 = vmax.f32 %v424, 0.0
        %v482 = vmax.f32 %v428, 0.0
        %v483 = vmax.f32 %v430, 0.0
        %v484 = vmax.f32 %v432, 0.0
        %v485 = vmax.f32 %v434, 0.0
        %v486 = vmax.f32 %v438, 0.0
        %v487 = vmax.f32 %v440, 0.0
        %v488 = vmax.f32 %v442, 0.0
        %v489 = vmax.f32 %v444, 0.0
        %v490 = vmax.f32 %v448, 0.0
        %v491 = vmax.f32 %v450, 0.0
        %v492 = vmax.f32 %v452, 0.0
        %v493 = vmax.f32 %v454, 0.0
        %v494 = vmax.f32 %v458, 0.0
        %v495 = vmax.f32 %v460, 0.0
        %v496 = vmax.f32 %v462, 0.0
        %v497 = vmax.f32 %v464, 0.0
        %v498 = vpack.c.bf16 %v468, %v466
        %v499 = vpack.c.bf16 %v469, %v467
        %v500 = vpack.c.bf16 %v472, %v470
        %v501 = vpack.c.bf16 %v473, %v471
        %v502 = vpack.c.bf16 %v476, %v474
        %v503 = vpack.c.bf16 %v477, %v475
        %v504 = vpack.c.bf16 %v480, %v478
        %v505 = vpack.c.bf16 %v481, %v479
        %v506 = vpack.c.bf16 %v484, %v482
        %v507 = vpack.c.bf16 %v485, %v483
        %v508 = vpack.c.bf16 %v488, %v486
        %v509 = vpack.c.bf16 %v489, %v487
        %v510 = vpack.c.bf16 %v492, %v490
        %v511 = vpack.c.bf16 %v493, %v491
        %v512 = vpack.c.bf16 %v496, %v494
        %v513 = vpack.c.bf16 %v497, %v495
        %v514 = vld [vmem:[#allocation2] sm:$0xff]
        %v515 = vld [vmem:[#allocation2 + $0x8] sm:$0xff]
        %v516 = vld [vmem:[#allocation2 + $0x10] sm:$0xff]
        %v517 = vld [vmem:[#allocation2 + $0x18] sm:$0xff]
        %v518 = vld [vmem:[#allocation2 + $0x20] sm:$0xff]
        %v519 = vld [vmem:[#allocation2 + $0x28] sm:$0xff]
        %v520 = vld [vmem:[#allocation2 + $0x30] sm:$0xff]
        %v521 = vld [vmem:[#allocation2 + $0x38] sm:$0xff]
        %v522 = vld [vmem:[#allocation2 + $0x40] sm:$0xff]
        %v523 = vld [vmem:[#allocation2 + $0x48] sm:$0xff]
        %v524 = vld [vmem:[#allocation2 + $0x50] sm:$0xff]
        %v525 = vld [vmem:[#allocation2 + $0x58] sm:$0xff]
        %v526 = vld [vmem:[#allocation2 + $0x60] sm:$0xff]
        %v527 = vld [vmem:[#allocation2 + $0x68] sm:$0xff]
        %v528 = vld [vmem:[#allocation2 + $0x70] sm:$0xff]
        %v529 = vld [vmem:[#allocation2 + $0x78] sm:$0xff]
        %v530 = vld [vmem:[#allocation2 + $0x80] sm:$0xff]
        %v531 = vld [vmem:[#allocation2 + $0x88] sm:$0xff]
        %v532 = vld [vmem:[#allocation2 + $0x90] sm:$0xff]
        %v533 = vld [vmem:[#allocation2 + $0x98] sm:$0xff]
        %v534 = vld [vmem:[#allocation2 + $0xa0] sm:$0xff]
        %v535 = vld [vmem:[#allocation2 + $0xa8] sm:$0xff]
        %v536 = vld [vmem:[#allocation2 + $0xb0] sm:$0xff]
        %v537 = vld [vmem:[#allocation2 + $0xb8] sm:$0xff]
        %v538 = vld [vmem:[#allocation2 + $0xc0] sm:$0xff]
        %v539 = vld [vmem:[#allocation2 + $0xc8] sm:$0xff]
        %v540 = vld [vmem:[#allocation2 + $0xd0] sm:$0xff]
        %v541 = vld [vmem:[#allocation2 + $0xd8] sm:$0xff]
        %v542 = vld [vmem:[#allocation2 + $0xe0] sm:$0xff]
        %v543 = vld [vmem:[#allocation2 + $0xe8] sm:$0xff]
        %v544 = vld [vmem:[#allocation2 + $0xf0] sm:$0xff]
        %v545 = vld [vmem:[#allocation2 + $0xf8] sm:$0xff]
        %v547 = vlaneseq
        %v548 = vshrl.u32 %v547, 7
        %v549 = vsub.s32 0, %v548
        %v550 = vrot.slane %v246, %v549
        %v551 = vlaneseq
        %v552 = vshrl.u32 %v551, 7
        %v553 = vsub.s32 1, %v552
        %v554 = vrot.slane %v246, %v553
        %v589 = vunpack.c.l.b16 %v514
        %v590 = vunpack.c.h.b16 %v514
        %v591 = vunpack.c.l.b16 %v515
        %v592 = vunpack.c.h.b16 %v515
        %v593 = vunpack.c.l.b16 %v516
        %v594 = vunpack.c.h.b16 %v516
        %v595 = vunpack.c.l.b16 %v517
        %v596 = vunpack.c.h.b16 %v517
        %v597 = vunpack.c.l.b16 %v518
        %v598 = vunpack.c.h.b16 %v518
        %v599 = vunpack.c.l.b16 %v519
        %v600 = vunpack.c.h.b16 %v519
        %v601 = vunpack.c.l.b16 %v520
        %v602 = vunpack.c.h.b16 %v520
        %v603 = vunpack.c.l.b16 %v521
        %v604 = vunpack.c.h.b16 %v521
        %v605 = vunpack.c.l.b16 %v522
        %v606 = vunpack.c.h.b16 %v522
        %v607 = vunpack.c.l.b16 %v523
        %v608 = vunpack.c.h.b16 %v523
        %v609 = vunpack.c.l.b16 %v524
        %v610 = vunpack.c.h.b16 %v524
        %v611 = vunpack.c.l.b16 %v525
        %v612 = vunpack.c.h.b16 %v525
        %v613 = vunpack.c.l.b16 %v526
        %v614 = vunpack.c.h.b16 %v526
        %v615 = vunpack.c.l.b16 %v527
        %v616 = vunpack.c.h.b16 %v527
        %v617 = vunpack.c.l.b16 %v528
        %v618 = vunpack.c.h.b16 %v528
        %v619 = vunpack.c.l.b16 %v529
        %v620 = vunpack.c.h.b16 %v529
        %v621 = vunpack.c.l.b16 %v530
        %v622 = vunpack.c.h.b16 %v530
        %v623 = vunpack.c.l.b16 %v531
        %v624 = vunpack.c.h.b16 %v531
        %v625 = vunpack.c.l.b16 %v532
        %v626 = vunpack.c.h.b16 %v532
        %v627 = vunpack.c.l.b16 %v533
        %v628 = vunpack.c.h.b16 %v533
        %v629 = vunpack.c.l.b16 %v534
        %v630 = vunpack.c.h.b16 %v534
        %v631 = vunpack.c.l.b16 %v535
        %v632 = vunpack.c.h.b16 %v535
        %v633 = vunpack.c.l.b16 %v536
        %v634 = vunpack.c.h.b16 %v536
        %v635 = vunpack.c.l.b16 %v537
        %v636 = vunpack.c.h.b16 %v537
        %v637 = vunpack.c.l.b16 %v538
        %v638 = vunpack.c.h.b16 %v538
        %v639 = vunpack.c.l.b16 %v539
        %v640 = vunpack.c.h.b16 %v539
        %v641 = vunpack.c.l.b16 %v540
        %v642 = vunpack.c.h.b16 %v540
        %v643 = vunpack.c.l.b16 %v541
        %v644 = vunpack.c.h.b16 %v541
        %v645 = vunpack.c.l.b16 %v542
        %v646 = vunpack.c.h.b16 %v542
        %v647 = vunpack.c.l.b16 %v543
        %v648 = vunpack.c.h.b16 %v543
        %v649 = vunpack.c.l.b16 %v544
        %v650 = vunpack.c.h.b16 %v544
        %v651 = vunpack.c.l.b16 %v545
        %v652 = vunpack.c.h.b16 %v545
        %v653 = vpack.c.b16 %v591, %v589
        %v654 = vpack.c.b16 %v592, %v590
        %v655 = vpack.c.b16 %v595, %v593
        %v656 = vpack.c.b16 %v596, %v594
        %v657 = vpack.c.b16 %v599, %v597
        %v658 = vpack.c.b16 %v600, %v598
        %v659 = vpack.c.b16 %v603, %v601
        %v660 = vpack.c.b16 %v604, %v602
        %v661 = vpack.c.b16 %v607, %v605
        %v662 = vpack.c.b16 %v608, %v606
        %v663 = vpack.c.b16 %v611, %v609
        %v664 = vpack.c.b16 %v612, %v610
        %v665 = vpack.c.b16 %v615, %v613
        %v666 = vpack.c.b16 %v616, %v614
        %v667 = vpack.c.b16 %v619, %v617
        %v668 = vpack.c.b16 %v620, %v618
        %v669 = vpack.c.b16 %v623, %v621
        %v670 = vpack.c.b16 %v624, %v622
        %v671 = vpack.c.b16 %v627, %v625
        %v672 = vpack.c.b16 %v628, %v626
        %v673 = vpack.c.b16 %v631, %v629
        %v674 = vpack.c.b16 %v632, %v630
        %v675 = vpack.c.b16 %v635, %v633
        %v676 = vpack.c.b16 %v636, %v634
        %v677 = vpack.c.b16 %v639, %v637
        %v678 = vpack.c.b16 %v640, %v638
        %v679 = vpack.c.b16 %v643, %v641
        %v680 = vpack.c.b16 %v644, %v642
        %v681 = vpack.c.b16 %v647, %v645
        %v682 = vpack.c.b16 %v648, %v646
        %v683 = vpack.c.b16 %v651, %v649
        %v684 = vpack.c.b16 %v652, %v650
        %717 = vmatprep.subr.bf16.mxu0 %v654
        %718 = vmatpush1.bf16.msra.mxu0 %v653
        %719 = vmatprep.subr.bf16.mxu0 %v656
        %720 = vmatpush1.bf16.msra.mxu0 %v655
        %721 = vmatprep.subr.bf16.mxu0 %v658
        %722 = vmatpush1.bf16.msra.mxu0 %v657
        %723 = vmatprep.subr.bf16.mxu0 %v660
        %724 = vmatpush1.bf16.msra.mxu0 %v659
        %725 = vmatprep.subr.bf16.mxu0 %v662
        %726 = vmatpush1.bf16.msra.mxu0 %v661
        %727 = vmatprep.subr.bf16.mxu0 %v664
        %728 = vmatpush1.bf16.msra.mxu0 %v663
        %729 = vmatprep.subr.bf16.mxu0 %v666
        %730 = vmatpush1.bf16.msra.mxu0 %v665
        %731 = vmatprep.subr.bf16.mxu0 %v668
        %732 = vmatpush1.bf16.msra.mxu0 %v667
        %733 = vmatprep.subr.bf16.mxu0 %v670
        %734 = vmatpush1.bf16.msra.mxu0 %v669
        %735 = vmatprep.subr.bf16.mxu0 %v672
        %736 = vmatpush1.bf16.msra.mxu0 %v671
        %737 = vmatprep.subr.bf16.mxu0 %v674
        %738 = vmatpush1.bf16.msra.mxu0 %v673
        %739 = vmatprep.subr.bf16.mxu0 %v676
        %740 = vmatpush1.bf16.msra.mxu0 %v675
        %741 = vmatprep.subr.bf16.mxu0 %v678
        %742 = vmatpush1.bf16.msra.mxu0 %v677
        %743 = vmatprep.subr.bf16.mxu0 %v680
        %744 = vmatpush1.bf16.msra.mxu0 %v679
        %745 = vmatprep.subr.bf16.mxu0 %v682
        %746 = vmatpush1.bf16.msra.mxu0 %v681
        %747 = vmatprep.subr.bf16.mxu0 %v684
        %748 = vmatpush1.bf16.msra.mxu0 %v683
        %749 = vmatprep.mubr.bf16.mxu0 %v499
        %750 = vmatmul.mubr.bf16.gmra.mrb[0].mxu0 %v498
        %v751 = vpop.f32.mrb[0].mxu0
        %v752 = vadd.f32 %v550, %v751
        %v753 = vpop.f32.mrb[0].mxu0
        %v754 = vadd.f32 %v554, %v753
        %v755 = vpop.f32.mrb[0].mxu0
        %v756 = vadd.f32 %v550, %v755
        %v757 = vpop.f32.mrb[0].mxu0
        %v758 = vadd.f32 %v554, %v757
        %759 = vmatprep.mubr.bf16.mxu0 %v501
        %760 = vmatmul.mubr.bf16.gmra.mrb[0].mxu0 %v500
        %v761 = vpop.f32.mrb[0].mxu0
        %v762 = vadd.f32 %v550, %v761
        %v763 = vpop.f32.mrb[0].mxu0
        %v764 = vadd.f32 %v554, %v763
        %v765 = vpop.f32.mrb[0].mxu0
        %v766 = vadd.f32 %v550, %v765
        %v767 = vpop.f32.mrb[0].mxu0
        %v768 = vadd.f32 %v554, %v767
        %769 = vmatprep.mubr.bf16.mxu0 %v503
        %770 = vmatmul.mubr.bf16.gmra.mrb[0].mxu0 %v502
        %v771 = vpop.f32.mrb[0].mxu0
        %v772 = vadd.f32 %v550, %v771
        %v773 = vpop.f32.mrb[0].mxu0
        %v774 = vadd.f32 %v554, %v773
        %v775 = vpop.f32.mrb[0].mxu0
        %v776 = vadd.f32 %v550, %v775
        %v777 = vpop.f32.mrb[0].mxu0
        %v778 = vadd.f32 %v554, %v777
        %779 = vmatprep.mubr.bf16.mxu0 %v505
        %780 = vmatmul.mubr.bf16.gmra.mrb[0].mxu0 %v504
        %v781 = vpop.f32.mrb[0].mxu0
        %v782 = vadd.f32 %v550, %v781
        %v783 = vpop.f32.mrb[0].mxu0
        %v784 = vadd.f32 %v554, %v783
        %v785 = vpop.f32.mrb[0].mxu0
        %v786 = vadd.f32 %v550, %v785
        %v787 = vpop.f32.mrb[0].mxu0
        %v788 = vadd.f32 %v554, %v787
        %789 = vmatprep.mubr.bf16.mxu0 %v507
        %790 = vmatmul.mubr.bf16.gmra.mrb[0].mxu0 %v506
        %v791 = vpop.f32.mrb[0].mxu0
        %v792 = vadd.f32 %v550, %v791
        %v793 = vpop.f32.mrb[0].mxu0
        %v794 = vadd.f32 %v554, %v793
        %v795 = vpop.f32.mrb[0].mxu0
        %v796 = vadd.f32 %v550, %v795
        %v797 = vpop.f32.mrb[0].mxu0
        %v798 = vadd.f32 %v554, %v797
        %799 = vmatprep.mubr.bf16.mxu0 %v509
        %800 = vmatmul.mubr.bf16.gmra.mrb[0].mxu0 %v508
        %v801 = vpop.f32.mrb[0].mxu0
        %v802 = vadd.f32 %v550, %v801
        %v803 = vpop.f32.mrb[0].mxu0
        %v804 = vadd.f32 %v554, %v803
        %v805 = vpop.f32.mrb[0].mxu0
        %v806 = vadd.f32 %v550, %v805
        %v807 = vpop.f32.mrb[0].mxu0
        %v808 = vadd.f32 %v554, %v807
        %809 = vmatprep.mubr.bf16.mxu0 %v511
        %810 = vmatmul.mubr.bf16.gmra.mrb[0].mxu0 %v510
        %v811 = vpop.f32.mrb[0].mxu0
        %v812 = vadd.f32 %v550, %v811
        %v813 = vpop.f32.mrb[0].mxu0
        %v814 = vadd.f32 %v554, %v813
        %v815 = vpop.f32.mrb[0].mxu0
        %v816 = vadd.f32 %v550, %v815
        %v817 = vpop.f32.mrb[0].mxu0
        %v818 = vadd.f32 %v554, %v817
        %819 = vmatprep.mubr.bf16.mxu0 %v513
        %820 = vmatmul.mubr.bf16.gmra.mrb[0].mxu0 %v512
        %v821 = vpop.f32.mrb[0].mxu0
        %v822 = vadd.f32 %v550, %v821
        %v823 = vpop.f32.mrb[0].mxu0
        %v824 = vadd.f32 %v554, %v823
        %v825 = vpop.f32.mrb[0].mxu0
        %v826 = vadd.f32 %v550, %v825
        %v827 = vpop.f32.mrb[0].mxu0
        %v828 = vadd.f32 %v554, %v827
        %829 = vdwg.mxu0
        %v830 = vmax.f32 %v752, 0.0
        %v831 = vmax.f32 %v754, 0.0
        %v832 = vmax.f32 %v756, 0.0
        %v833 = vmax.f32 %v758, 0.0
        %v834 = vmax.f32 %v762, 0.0
        %v835 = vmax.f32 %v764, 0.0
        %v836 = vmax.f32 %v766, 0.0
        %v837 = vmax.f32 %v768, 0.0
        %v838 = vmax.f32 %v772, 0.0
        %v839 = vmax.f32 %v774, 0.0
        %v840 = vmax.f32 %v776, 0.0
        %v841 = vmax.f32 %v778, 0.0
        %v842 = vmax.f32 %v782, 0.0
        %v843 = vmax.f32 %v784, 0.0
        %v844 = vmax.f32 %v786, 0.0
        %v845 = vmax.f32 %v788, 0.0
        %v846 = vmax.f32 %v792, 0.0
        %v847 = vmax.f32 %v794, 0.0
        %v848 = vmax.f32 %v796, 0.0
        %v849 = vmax.f32 %v798, 0.0
        %v850 = vmax.f32 %v802, 0.0
        %v851 = vmax.f32 %v804, 0.0
        %v852 = vmax.f32 %v806, 0.0
        %v853 = vmax.f32 %v808, 0.0
        %v854 = vmax.f32 %v812, 0.0
        %v855 = vmax.f32 %v814, 0.0
        %v856 = vmax.f32 %v816, 0.0
        %v857 = vmax.f32 %v818, 0.0
        %v858 = vmax.f32 %v822, 0.0
        %v859 = vmax.f32 %v824, 0.0
        %v860 = vmax.f32 %v826, 0.0
        %v861 = vmax.f32 %v828, 0.0
        %v862 = vpack.c.bf16 %v832, %v830
        %v863 = vpack.c.bf16 %v833, %v831
        %v864 = vpack.c.bf16 %v836, %v834
        %v865 = vpack.c.bf16 %v837, %v835
        %v866 = vpack.c.bf16 %v840, %v838
        %v867 = vpack.c.bf16 %v841, %v839
        %v868 = vpack.c.bf16 %v844, %v842
        %v869 = vpack.c.bf16 %v845, %v843
        %v870 = vpack.c.bf16 %v848, %v846
        %v871 = vpack.c.bf16 %v849, %v847
        %v872 = vpack.c.bf16 %v852, %v850
        %v873 = vpack.c.bf16 %v853, %v851
        %v874 = vpack.c.bf16 %v856, %v854
        %v875 = vpack.c.bf16 %v857, %v855
        %v876 = vpack.c.bf16 %v860, %v858
        %v877 = vpack.c.bf16 %v861, %v859
        %v878 = vld [vmem:[%s3] sm:$0xf]
        %v879 = vld [vmem:[%s3 + $0x4] sm:$0xf]
        %v880 = vld [vmem:[%s3 + $0x8] sm:$0xf]
        %v881 = vld [vmem:[%s3 + $0xc] sm:$0xf]
        %v882 = vld [vmem:[%s3 + $0x10] sm:$0xf]
        %v883 = vld [vmem:[%s3 + $0x14] sm:$0xf]
        %v884 = vld [vmem:[%s3 + $0x18] sm:$0xf]
        %v885 = vld [vmem:[%s3 + $0x1c] sm:$0xf]
        %v886 = vld [vmem:[%s3 + $0x20] sm:$0xf]
        %v887 = vld [vmem:[%s3 + $0x24] sm:$0xf]
        %v888 = vld [vmem:[%s3 + $0x28] sm:$0xf]
        %v889 = vld [vmem:[%s3 + $0x2c] sm:$0xf]
        %v890 = vld [vmem:[%s3 + $0x30] sm:$0xf]
        %v891 = vld [vmem:[%s3 + $0x34] sm:$0xf]
        %v892 = vld [vmem:[%s3 + $0x38] sm:$0xf]
        %v893 = vld [vmem:[%s3 + $0x3c] sm:$0xf]
        %v894 = vld [vmem:[%s3 + $0x40] sm:$0xf]
        %v895 = vld [vmem:[%s3 + $0x44] sm:$0xf]
        %v896 = vld [vmem:[%s3 + $0x48] sm:$0xf]
        %v897 = vld [vmem:[%s3 + $0x4c] sm:$0xf]
        %v898 = vld [vmem:[%s3 + $0x50] sm:$0xf]
        %v899 = vld [vmem:[%s3 + $0x54] sm:$0xf]
        %v900 = vld [vmem:[%s3 + $0x58] sm:$0xf]
        %v901 = vld [vmem:[%s3 + $0x5c] sm:$0xf]
        %v902 = vld [vmem:[%s3 + $0x60] sm:$0xf]
        %v903 = vld [vmem:[%s3 + $0x64] sm:$0xf]
        %v904 = vld [vmem:[%s3 + $0x68] sm:$0xf]
        %v905 = vld [vmem:[%s3 + $0x6c] sm:$0xf]
        %v906 = vld [vmem:[%s3 + $0x70] sm:$0xf]
        %v907 = vld [vmem:[%s3 + $0x74] sm:$0xf]
        %v908 = vld [vmem:[%s3 + $0x78] sm:$0xf]
        %v909 = vld [vmem:[%s3 + $0x7c] sm:$0xf]
        %v910 = vlaneseq
        %v911 = vshrl.u32 %v910, 7
        %v912 = vsub.s32 0, %v911
        %v913 = vrot.slane %v247, %v912
        %v946 = vunpack.c.l.b16 %v878
        %v947 = vunpack.c.l.b16 %v879
        %v948 = vunpack.c.l.b16 %v880
        %v949 = vunpack.c.l.b16 %v881
        %v950 = vunpack.c.l.b16 %v882
        %v951 = vunpack.c.l.b16 %v883
        %v952 = vunpack.c.l.b16 %v884
        %v953 = vunpack.c.l.b16 %v885
        %v954 = vunpack.c.l.b16 %v886
        %v955 = vunpack.c.l.b16 %v887
        %v956 = vunpack.c.l.b16 %v888
        %v957 = vunpack.c.l.b16 %v889
        %v958 = vunpack.c.l.b16 %v890
        %v959 = vunpack.c.l.b16 %v891
        %v960 = vunpack.c.l.b16 %v892
        %v961 = vunpack.c.l.b16 %v893
        %v962 = vunpack.c.l.b16 %v894
        %v963 = vunpack.c.l.b16 %v895
        %v964 = vunpack.c.l.b16 %v896
        %v965 = vunpack.c.l.b16 %v897
        %v966 = vunpack.c.l.b16 %v898
        %v967 = vunpack.c.l.b16 %v899
        %v968 = vunpack.c.l.b16 %v900
        %v969 = vunpack.c.l.b16 %v901
        %v970 = vunpack.c.l.b16 %v902
        %v971 = vunpack.c.l.b16 %v903
        %v972 = vunpack.c.l.b16 %v904
        %v973 = vunpack.c.l.b16 %v905
        %v974 = vunpack.c.l.b16 %v906
        %v975 = vunpack.c.l.b16 %v907
        %v976 = vunpack.c.l.b16 %v908
        %v977 = vunpack.c.l.b16 %v909
        %v978 = vpack.c.b16 %v947, %v946
        %v979 = vpack.c.b16 %v949, %v948
        %v980 = vpack.c.b16 %v951, %v950
        %v981 = vpack.c.b16 %v953, %v952
        %v982 = vpack.c.b16 %v955, %v954
        %v983 = vpack.c.b16 %v957, %v956
        %v984 = vpack.c.b16 %v959, %v958
        %v985 = vpack.c.b16 %v961, %v960
        %v986 = vpack.c.b16 %v963, %v962
        %v987 = vpack.c.b16 %v965, %v964
        %v988 = vpack.c.b16 %v967, %v966
        %v989 = vpack.c.b16 %v969, %v968
        %v990 = vpack.c.b16 %v971, %v970
        %v991 = vpack.c.b16 %v973, %v972
        %v992 = vpack.c.b16 %v975, %v974
        %v993 = vpack.c.b16 %v977, %v976
        %1010 = vmatprep.subr.bf16.mxu0 0
        %1011 = vmatpush1.bf16.msra.mxu0 %v978
        %1012 = vmatprep.subr.bf16.mxu0 0
        %1013 = vmatpush1.bf16.msra.mxu0 %v979
        %1014 = vmatprep.subr.bf16.mxu0 0
        %1015 = vmatpush1.bf16.msra.mxu0 %v980
        %1016 = vmatprep.subr.bf16.mxu0 0
        %1017 = vmatpush1.bf16.msra.mxu0 %v981
        %1018 = vmatprep.subr.bf16.mxu0 0
        %1019 = vmatpush1.bf16.msra.mxu0 %v982
        %1020 = vmatprep.subr.bf16.mxu0 0
        %1021 = vmatpush1.bf16.msra.mxu0 %v983
        %1022 = vmatprep.subr.bf16.mxu0 0
        %1023 = vmatpush1.bf16.msra.mxu0 %v984
        %1024 = vmatprep.subr.bf16.mxu0 0
        %1025 = vmatpush1.bf16.msra.mxu0 %v985
        %1026 = vmatprep.subr.bf16.mxu0 0
        %1027 = vmatpush1.bf16.msra.mxu0 %v986
        %1028 = vmatprep.subr.bf16.mxu0 0
        %1029 = vmatpush1.bf16.msra.mxu0 %v987
        %1030 = vmatprep.subr.bf16.mxu0 0
        %1031 = vmatpush1.bf16.msra.mxu0 %v988
        %1032 = vmatprep.subr.bf16.mxu0 0
        %1033 = vmatpush1.bf16.msra.mxu0 %v989
        %1034 = vmatprep.subr.bf16.mxu0 0
        %1035 = vmatpush1.bf16.msra.mxu0 %v990
        %1036 = vmatprep.subr.bf16.mxu0 0
        %1037 = vmatpush1.bf16.msra.mxu0 %v991
        %1038 = vmatprep.subr.bf16.mxu0 0
        %1039 = vmatpush1.bf16.msra.mxu0 %v992
        %1040 = vmatprep.subr.bf16.mxu0 0
        %1041 = vmatpush1.bf16.msra.mxu0 %v993
        %1042 = vmatprep.mubr.bf16.mxu0 %v863
        %1043 = vmatmul.mubr.bf16.gmra.mrb[0].mxu0 %v862
        %v1044 = vpop.f32.mrb[0].mxu0
        %v1045 = vadd.f32 %v913, %v1044
        %v1046 = vpop.f32.mrb[0].mxu0
        %v1047 = vpop.f32.mrb[0].mxu0
        %v1048 = vadd.f32 %v913, %v1047
        %v1049 = vpop.f32.mrb[0].mxu0
        %1050 = vmatprep.mubr.bf16.mxu0 %v865
        %1051 = vmatmul.mubr.bf16.gmra.mrb[0].mxu0 %v864
        %v1052 = vpop.f32.mrb[0].mxu0
        %v1053 = vadd.f32 %v913, %v1052
        %v1054 = vpop.f32.mrb[0].mxu0
        %v1055 = vpop.f32.mrb[0].mxu0
        %v1056 = vadd.f32 %v913, %v1055
        %v1057 = vpop.f32.mrb[0].mxu0
        %1058 = vmatprep.mubr.bf16.mxu0 %v867
        %1059 = vmatmul.mubr.bf16.gmra.mrb[0].mxu0 %v866
        %v1060 = vpop.f32.mrb[0].mxu0
        %v1061 = vadd.f32 %v913, %v1060
        %v1062 = vpop.f32.mrb[0].mxu0
        %v1063 = vpop.f32.mrb[0].mxu0
        %v1064 = vadd.f32 %v913, %v1063
        %v1065 = vpop.f32.mrb[0].mxu0
        %1066 = vmatprep.mubr.bf16.mxu0 %v869
        %1067 = vmatmul.mubr.bf16.gmra.mrb[0].mxu0 %v868
        %v1068 = vpop.f32.mrb[0].mxu0
        %v1069 = vadd.f32 %v913, %v1068
        %v1070 = vpop.f32.mrb[0].mxu0
        %v1071 = vpop.f32.mrb[0].mxu0
        %v1072 = vadd.f32 %v913, %v1071
        %v1073 = vpop.f32.mrb[0].mxu0
        %1074 = vmatprep.mubr.bf16.mxu0 %v871
        %1075 = vmatmul.mubr.bf16.gmra.mrb[0].mxu0 %v870
        %v1076 = vpop.f32.mrb[0].mxu0
        %v1077 = vadd.f32 %v913, %v1076
        %v1078 = vpop.f32.mrb[0].mxu0
        %v1079 = vpop.f32.mrb[0].mxu0
        %v1080 = vadd.f32 %v913, %v1079
        %v1081 = vpop.f32.mrb[0].mxu0
        %1082 = vmatprep.mubr.bf16.mxu0 %v873
        %1083 = vmatmul.mubr.bf16.gmra.mrb[0].mxu0 %v872
        %v1084 = vpop.f32.mrb[0].mxu0
        %v1085 = vadd.f32 %v913, %v1084
        %v1086 = vpop.f32.mrb[0].mxu0
        %v1087 = vpop.f32.mrb[0].mxu0
        %v1088 = vadd.f32 %v913, %v1087
        %v1089 = vpop.f32.mrb[0].mxu0
        %1090 = vmatprep.mubr.bf16.mxu0 %v875
        %1091 = vmatmul.mubr.bf16.gmra.mrb[0].mxu0 %v874
        %v1092 = vpop.f32.mrb[0].mxu0
        %v1093 = vadd.f32 %v913, %v1092
        %v1094 = vpop.f32.mrb[0].mxu0
        %v1095 = vpop.f32.mrb[0].mxu0
        %v1096 = vadd.f32 %v913, %v1095
        %v1097 = vpop.f32.mrb[0].mxu0
        %1098 = vmatprep.mubr.bf16.mxu0 %v877
        %1099 = vmatmul.mubr.bf16.gmra.mrb[0].mxu0 %v876
        %v1100 = vpop.f32.mrb[0].mxu0
        %v1101 = vadd.f32 %v913, %v1100
        %v1102 = vpop.f32.mrb[0].mxu0
        %v1103 = vpop.f32.mrb[0].mxu0
        %v1104 = vadd.f32 %v913, %v1103
        %v1105 = vpop.f32.mrb[0].mxu0
        %1106 = vdwg.mxu0
        %1107 = vmax.xlane.f32.xlu0 %v1045
        %v1108 = vpop.xlane.xlu0 %1107
        %1109 = vmax.xlane.f32.xlu0 %v1048
        %v1110 = vpop.xlane.xlu0 %1109
        %1111 = vmax.xlane.f32.xlu0 %v1053
        %v1112 = vpop.xlane.xlu0 %1111
        %1113 = vmax.xlane.f32.xlu0 %v1056
        %v1114 = vpop.xlane.xlu0 %1113
        %1115 = vmax.xlane.f32.xlu0 %v1061
        %v1116 = vpop.xlane.xlu0 %1115
        %1117 = vmax.xlane.f32.xlu0 %v1064
        %v1118 = vpop.xlane.xlu0 %1117
        %1119 = vmax.xlane.f32.xlu0 %v1069
        %v1120 = vpop.xlane.xlu0 %1119
        %1121 = vmax.xlane.f32.xlu0 %v1072
        %v1122 = vpop.xlane.xlu0 %1121
        %1123 = vmax.xlane.f32.xlu0 %v1077
        %v1124 = vpop.xlane.xlu0 %1123
        %1125 = vmax.xlane.f32.xlu0 %v1080
        %v1126 = vpop.xlane.xlu0 %1125
        %1127 = vmax.xlane.f32.xlu0 %v1085
        %v1128 = vpop.xlane.xlu0 %1127
        %1129 = vmax.xlane.f32.xlu0 %v1088
        %v1130 = vpop.xlane.xlu0 %1129
        %1131 = vmax.xlane.f32.xlu0 %v1093
        %v1132 = vpop.xlane.xlu0 %1131
        %1133 = vmax.xlane.f32.xlu0 %v1096
        %v1134 = vpop.xlane.xlu0 %1133
        %1135 = vmax.xlane.f32.xlu0 %v1101
        %v1136 = vpop.xlane.xlu0 %1135
        %1137 = vmax.xlane.f32.xlu0 %v1104
        %v1138 = vpop.xlane.xlu0 %1137
        %v1139 = vsub.f32 %v1045, %v1108
        %v1140 = vsub.f32 %v1048, %v1110
        %v1141 = vsub.f32 %v1053, %v1112
        %v1142 = vsub.f32 %v1056, %v1114
        %v1143 = vsub.f32 %v1061, %v1116
        %v1144 = vsub.f32 %v1064, %v1118
        %v1145 = vsub.f32 %v1069, %v1120
        %v1146 = vsub.f32 %v1072, %v1122
        %v1147 = vsub.f32 %v1077, %v1124
        %v1148 = vsub.f32 %v1080, %v1126
        %v1149 = vsub.f32 %v1085, %v1128
        %v1150 = vsub.f32 %v1088, %v1130
        %v1151 = vsub.f32 %v1093, %v1132
        %v1152 = vsub.f32 %v1096, %v1134
        %v1153 = vsub.f32 %v1101, %v1136
        %v1154 = vsub.f32 %v1104, %v1138
        %v1155 = vmul.f32 %v1139, 1.442695
        %v1156 = vpow.pop %v1155
        %v1157 = vmul.f32 %v1140, 1.442695
        %v1158 = vpow.pop %v1157
        %v1159 = vmul.f32 %v1141, 1.442695
        %v1160 = vpow.pop %v1159
        %v1161 = vmul.f32 %v1142, 1.442695
        %v1162 = vpow.pop %v1161
        %v1163 = vmul.f32 %v1143, 1.442695
        %v1164 = vpow.pop %v1163
        %v1165 = vmul.f32 %v1144, 1.442695
        %v1166 = vpow.pop %v1165
        %v1167 = vmul.f32 %v1145, 1.442695
        %v1168 = vpow.pop %v1167
        %v1169 = vmul.f32 %v1146, 1.442695
        %v1170 = vpow.pop %v1169
        %v1171 = vmul.f32 %v1147, 1.442695
        %v1172 = vpow.pop %v1171
        %v1173 = vmul.f32 %v1148, 1.442695
        %v1174 = vpow.pop %v1173
        %v1175 = vmul.f32 %v1149, 1.442695
        %v1176 = vpow.pop %v1175
        %v1177 = vmul.f32 %v1150, 1.442695
        %v1178 = vpow.pop %v1177
        %v1179 = vmul.f32 %v1151, 1.442695
        %v1180 = vpow.pop %v1179
        %v1181 = vmul.f32 %v1152, 1.442695
        %v1182 = vpow.pop %v1181
        %v1183 = vmul.f32 %v1153, 1.442695
        %v1184 = vpow.pop %v1183
        %v1185 = vmul.f32 %v1154, 1.442695
        %v1186 = vpow.pop %v1185
        %1187 = vadd.xlane.f32.xlu0 %v1156
        %v1188 = vpop.xlane.xlu0 %1187
        %1189 = vadd.xlane.f32.xlu0 %v1158
        %v1190 = vpop.xlane.xlu0 %1189
        %1191 = vadd.xlane.f32.xlu0 %v1160
        %v1192 = vpop.xlane.xlu0 %1191
        %1193 = vadd.xlane.f32.xlu0 %v1162
        %v1194 = vpop.xlane.xlu0 %1193
        %1195 = vadd.xlane.f32.xlu0 %v1164
        %v1196 = vpop.xlane.xlu0 %1195
        %1197 = vadd.xlane.f32.xlu0 %v1166
        %v1198 = vpop.xlane.xlu0 %1197
        %1199 = vadd.xlane.f32.xlu0 %v1168
        %v1200 = vpop.xlane.xlu0 %1199
        %1201 = vadd.xlane.f32.xlu0 %v1170
        %v1202 = vpop.xlane.xlu0 %1201
        %1203 = vadd.xlane.f32.xlu0 %v1172
        %v1204 = vpop.xlane.xlu0 %1203
        %1205 = vadd.xlane.f32.xlu0 %v1174
        %v1206 = vpop.xlane.xlu0 %1205
        %1207 = vadd.xlane.f32.xlu0 %v1176
        %v1208 = vpop.xlane.xlu0 %1207
        %1209 = vadd.xlane.f32.xlu0 %v1178
        %v1210 = vpop.xlane.xlu0 %1209
        %1211 = vadd.xlane.f32.xlu0 %v1180
        %v1212 = vpop.xlane.xlu0 %1211
        %1213 = vadd.xlane.f32.xlu0 %v1182
        %v1214 = vpop.xlane.xlu0 %1213
        %1215 = vadd.xlane.f32.xlu0 %v1184
        %v1216 = vpop.xlane.xlu0 %1215
        %1217 = vadd.xlane.f32.xlu0 %v1186
        %v1218 = vpop.xlane.xlu0 %1217
        %v1219 = vrcp.pop %v1188
        %v1220 = vrcp.pop %v1190
        %v1221 = vrcp.pop %v1192
        %v1222 = vrcp.pop %v1194
        %v1223 = vrcp.pop %v1196
        %v1224 = vrcp.pop %v1198
        %v1225 = vrcp.pop %v1200
        %v1226 = vrcp.pop %v1202
        %v1227 = vrcp.pop %v1204
        %v1228 = vrcp.pop %v1206
        %v1229 = vrcp.pop %v1208
        %v1230 = vrcp.pop %v1210
        %v1231 = vrcp.pop %v1212
        %v1232 = vrcp.pop %v1214
        %v1233 = vrcp.pop %v1216
        %v1234 = vrcp.pop %v1218
        %v1235 = vmul.f32 %v1156, %v1219
        %v1236 = vmul.f32 %v1158, %v1220
        %v1237 = vmul.f32 %v1160, %v1221
        %v1238 = vmul.f32 %v1162, %v1222
        %v1239 = vmul.f32 %v1164, %v1223
        %v1240 = vmul.f32 %v1166, %v1224
        %v1241 = vmul.f32 %v1168, %v1225
        %v1242 = vmul.f32 %v1170, %v1226
        %v1243 = vmul.f32 %v1172, %v1227
        %v1244 = vmul.f32 %v1174, %v1228
        %v1245 = vmul.f32 %v1176, %v1229
        %v1246 = vmul.f32 %v1178, %v1230
        %v1247 = vmul.f32 %v1180, %v1231
        %v1248 = vmul.f32 %v1182, %v1232
        %v1249 = vmul.f32 %v1184, %v1233
        %v1250 = vmul.f32 %v1186, %v1234
        %1251 = vst [vmem:[%s241] sm:$0xff] %v1235
        %1252 = vst [vmem:[%s241 + $0x8] sm:$0xff] %v1236
        %1253 = vst [vmem:[%s241 + $0x10] sm:$0xff] %v1237
        %1254 = vst [vmem:[%s241 + $0x18] sm:$0xff] %v1238
        %1255 = vst [vmem:[%s241 + $0x20] sm:$0xff] %v1239
        %1256 = vst [vmem:[%s241 + $0x28] sm:$0xff] %v1240
        %1257 = vst [vmem:[%s241 + $0x30] sm:$0xff] %v1241
        %1258 = vst [vmem:[%s241 + $0x38] sm:$0xff] %v1242
        %1259 = vst [vmem:[%s241 + $0x40] sm:$0xff] %v1243
        %1260 = vst [vmem:[%s241 + $0x48] sm:$0xff] %v1244
        %1261 = vst [vmem:[%s241 + $0x50] sm:$0xff] %v1245
        %1262 = vst [vmem:[%s241 + $0x58] sm:$0xff] %v1246
        %1263 = vst [vmem:[%s241 + $0x60] sm:$0xff] %v1247
        %1264 = vst [vmem:[%s241 + $0x68] sm:$0xff] %v1248
        %1265 = vst [vmem:[%s241 + $0x70] sm:$0xff] %v1249
        %1266 = vst [vmem:[%s241 + $0x78] sm:$0xff] %v1250
        %s1267 = smul.u32 16, %s17
        %p1268 = scmp.lt.s32.totalorder %s1267, 31
        %s1269 = scalar_select %p1268, %s1267, 31
        %s1270 = smul.addr %s1269, 8
        %s1271 = scalar_lea.vmem %s5, %s1270
        // Predicated region
        $region45: #{actor_forward.1} parent=39 // pred_check
          %p1272 = pneg %p145
        $region46: #{actor_forward.1} parent=39 // pred_check_branch
          %1274 = sbr.rel (%p1272) target = $region48
        $region47: #{actor_forward.1} parent=39 // pred_region
          %s1275 = smul.u32 16, %s17
        $region48: #{actor_forward.1} parent=39 // pred_fallthru
          _
      $region40: #{actor_forward.1} parent=5 // pred_fallthru
        _
      %p1276 = scmp.le.s32.totalorder 2, %s12
      // Predicated region
      $region49: #{actor_forward.1} parent=5 // pred_check
        %p1277 = pneg %p1276
      $region50: #{actor_forward.1} parent=5 // pred_check_branch
        %1279 = sbr.rel (%p1277) target = $region52
      $region51: #{actor_forward.1} parent=5 // pred_region
        %s1280 = ssub.s32 %s12, 2
        // Predicated region
        $region53: #{actor_forward.1} parent=51 // pred_check
          %p1281 = pneg %p151
        $region54: #{actor_forward.1} parent=51 // pred_check_branch
          %1283 = sbr.rel (%p1281) target = $region56
        $region55: #{actor_forward.1} parent=51 // pred_region
          %s1284 = smul.u32 16, %s18
          %p1285 = scmp.lt.s32.totalorder %s1284, 31
          %s1286 = scalar_select %p1285, %s1284, 31
          %s1287 = smul.addr %s1286, 8
          %s1288 = scalar_lea.vmem %s5, %s1287
        $region56: #{actor_forward.1} parent=51 // pred_fallthru
          _
      $region52: #{actor_forward.1} parent=5 // pred_fallthru
        _
    $region6: #{actor_forward.1} parent=1 // loop_footer
      %s16 = sadd.s32 1, %s12
    $region7: #{actor_forward.1} parent=1 // loop_footer_branch
      %11 = sbr.rel target = $region3
    $region8: #{actor_forward.1} parent=1 // loop_exit
      _
    %1289 = vsyncpa [#allocation3], 1
    %s1290 = scalar_lea.sflag [#allocation3], 1
    %1291 = vsyncpa %s1290, 1

</llo_original>
